<compile_context>
chip_gen: v6e
topology: v6e:2x2x1
jax: 0.10.0
libtpu: 0.0.40
codegen_flags: <defaults>
</compile_context>

<pallas_src>
import functools

import jax
import jax.numpy as jnp
from jax import lax
from jax.experimental import pallas as pl
from jax.experimental.pallas import tpu as pltpu


def _static_pow(x, g):
    """x ** g for a *static* exponent g.

    Small integer exponents lower to plain VPU multiplies (no EUP work);
    fractional exponents clamp the base to >= 0 to avoid NaN from tiny
    negative rounding of (1 - xs_pos - xs_neg).
    """
    gi = int(g)
    if float(gi) == float(g) and 0 <= gi <= 16:
        if gi == 0:
            return jnp.ones_like(x)
        result = None
        base = x
        e = gi
        while e:
            if e & 1:
                result = base if result is None else result * base
            e >>= 1
            if e:
                base = base * base
        return result
    return jnp.power(jnp.maximum(x, 0.0), jnp.float32(g))


def _cyclical_focal_kernel(x_ref, tgt_ref, out_ref, *,
                           gamma_pos, gamma_neg, gamma_hc, eps, eta, b_total):
    x = x_ref[...].astype(jnp.float32)               # (TB, C)
    tb, num_classes = x.shape

    # ---- softmax pieces (exp reused; log_softmax is NOT materialized) ----
    m = jnp.max(x, axis=-1, keepdims=True)
    xm = x - m
    e = jnp.exp(xm)                                  # only exp over the tile
    s = jnp.sum(e, axis=-1, keepdims=True)           # (TB, 1)
    log_s = jnp.log(s)                               # (TB, 1)

    # Probabilities are only needed if some focal weight uses them.
    need_p = (gamma_pos != 0) or (gamma_hc != 0) or (eps > 0 and gamma_neg != 0)
    p = e * (1.0 / s) if need_p else None

    # ---- one-hot structure without materializing the one-hot tensor ----
    tgt = tgt_ref[...]                               # (TB, 1) int32
    cls_idx = lax.broadcasted_iota(jnp.int32, (tb, num_classes), 1)
    is_target = cls_idx == tgt                       # (TB, C) bool

    # ---- cyclical focal weights, specialized on the static gammas / eps ----
    # target entries:     base = 1 - p, w_t  = (1-eta)*(1-p)^gp + eta*(1+p)^ghc
    # non-target entries: base = p,     w_nt = (1-eta)*p^gn     + eta
    one_minus_eta = 1.0 - eta
    if gamma_pos == 0 and gamma_hc == 0:
        w_t = 1.0                                    # (1-eta)*1 + eta*1
    else:
        a_t = 1.0 if gamma_pos == 0 else _static_pow(1.0 - p, gamma_pos)
        p_t = 1.0 if gamma_hc == 0 else _static_pow(1.0 + p, gamma_hc)
        w_t = one_minus_eta * a_t + eta * p_t

    if eps > 0:
        tgt_coef = 1.0 - eps + eps / num_classes
        off_coef = eps / num_classes
        if gamma_neg == 0:
            w_nt = 1.0
        else:
            w_nt = one_minus_eta * _static_pow(p, gamma_neg) + eta
        coef = jnp.where(is_target, tgt_coef * w_t, off_coef * w_nt)
    else:
        # off-target smoothing coefficient is exactly 0 -> drop the w_nt chain.
        coef = jnp.where(is_target, 1.0 * w_t, 0.0)

    # ---- fused loss: -(sum(coef * (xm - log s))) = log_s*sum(coef) - sum(coef*xm) ----
    sum_cxm = jnp.sum(coef * xm, axis=-1, keepdims=True)   # (TB, 1)
    sum_c = jnp.sum(coef, axis=-1, keepdims=True)          # (TB, 1)
    per_sample = (log_s * sum_c - sum_cxm).reshape(1, tb)

    # ---- lane-dense store; mask padded tail rows of the last tile to 0 ----
    row = pl.program_id(0) * tb + lax.broadcasted_iota(jnp.int32, (1, tb), 1)
    per_sample = jnp.where(row < b_total, per_sample, 0.0)
    out_ref[...] = per_sample.reshape(1, 1, tb)


def cyclical_focal_loss(inputs, target, epoch, *,
                        gamma_pos=0, gamma_neg=4, gamma_hc=0, eps=0.1,
                        reduction='mean', epochs=200, factor=2,
                        block_batch=None):
    """JAX/Pallas equivalent of Cyclical_FocalLoss.forward.

    NOTE: epoch / epochs / factor must be static Python numbers (eta is baked
    into the compiled kernel); passing a traced epoch will fail at trace time.
    """
    inputs = jnp.asarray(inputs)          # keep native dtype (bf16 streams half the HBM bytes)
    B, C = inputs.shape

    target = jnp.asarray(target)
    if target.ndim > 1:
        target = jnp.argmax(target, axis=1)
    target = target.astype(jnp.int32).reshape(B, 1)

    # eta from the cyclical schedule (static config).
    if factor * epoch < epochs:
        eta = 1.0 - factor * epoch / (epochs - 1)
    else:
        eta = (factor * epoch / (epochs - 1) - 1.0) / (factor - 1.0)

    # ---- batch tile size ----
    # ~2 MiB of input per block: with double-buffered input + ~5 live f32 (TB, C)
    # intermediates this stays comfortably under the 32 MiB scoped-VMEM limit even
    # on v7x (64 MiB physical), while keeping per-grid-step overhead negligible.
    itemsize = jnp.dtype(inputs.dtype).itemsize
    row_bytes = max(C * itemsize, 1)
    if block_batch is not None:
        tb = int(block_batch)
        if tb >= B:
            tb = B                        # single full-extent tile
        else:
            tb = max(8, (tb // 8) * 8)
    else:
        tb = min((2 << 20) // row_bytes, 2048)
        if tb >= B:
            if B >= 256:
                # Guarantee >= 2 grid steps so v7x's two TensorCores both get work.
                half = -(-B // 2)
                tb = ((half + 127) // 128) * 128
                if tb >= B:               # rounding would swallow the split
                    tb = ((half + 7) // 8) * 8
            else:
                tb = B                    # tiny batch: single full-extent tile
        else:
            # Multiple of 128 -> unmasked lane-dense output store, even bf16 packing.
            tb = max(128, (tb // 128) * 128)
    n_tiles = pl.cdiv(B, tb)

    kernel = functools.partial(
        _cyclical_focal_kernel,
        gamma_pos=gamma_pos, gamma_neg=gamma_neg, gamma_hc=gamma_hc,
        eps=eps, eta=float(eta), b_total=B)

    cost = pl.CostEstimate(
        flops=8 * B * C,
        transcendentals=B * C + 2 * B,
        bytes_accessed=B * C * itemsize + B * 4 + n_tiles * tb * 4)

    out = pl.pallas_call(
        kernel,
        out_shape=jax.ShapeDtypeStruct((n_tiles, 1, tb), jnp.float32),
        grid=(n_tiles,),
        in_specs=[
            pl.BlockSpec((tb, C), lambda i: (i, 0)),    # logits tile (native dtype)
            pl.BlockSpec((tb, 1), lambda i: (i, 0)),    # class indices tile
        ],
        out_specs=pl.BlockSpec((1, 1, tb), lambda i: (i, 0, 0)),  # lane-dense per-sample losses
        compiler_params=pltpu.CompilerParams(
            dimension_semantics=("parallel",),          # shard batch tiles across TCs
            vmem_limit_bytes=32 * 1024 * 1024),
        cost_estimate=cost,
    )(inputs, target)

    per_sample = out.reshape(n_tiles * tb)[:B]          # padded tail rows are already 0
    if reduction == 'mean':
        return jnp.sum(per_sample) / jnp.float32(B)
    return per_sample


def _reference_loss(inputs, target, epoch, *, gamma_pos=0, gamma_neg=4, gamma_hc=0,
                    eps=0.1, reduction='mean', epochs=200, factor=2):
    """Pure-JAX reference mirroring the PyTorch code (for sanity checking)."""
    inputs = jnp.asarray(inputs, jnp.float32)
    C = inputs.shape[-1]
    log_preds = jax.nn.log_softmax(inputs, axis=-1)
    targets = jax.nn.one_hot(target, C, dtype=jnp.float32)
    if factor * epoch < epochs:
        eta = 1.0 - factor * epoch / (epochs - 1)
    else:
        eta = (factor * epoch / (epochs - 1) - 1.0) / (factor - 1.0)
    anti = 1.0 - targets
    xs_pos = jnp.exp(log_preds) * targets
    xs_neg = (1.0 - jnp.exp(log_preds)) * anti
    asym_w = jnp.power(1.0 - xs_pos - xs_neg, gamma_pos * targets + gamma_neg * anti)
    pos_w = jnp.power(1.0 + xs_pos, gamma_hc * targets)
    log_preds = log_preds * ((1.0 - eta) * asym_w + eta * pos_w)
    tc = targets * (1.0 - eps) + eps / C if eps > 0 else targets
    loss = (-tc * log_preds).sum(axis=-1)
    return loss.mean() if reduction == 'mean' else loss


if __name__ == "__main__":
    key = jax.random.PRNGKey(0)
    k1, k2, k3, k4, k5, k6 = jax.random.split(key, 6)

    # --- case 1: small single-tile, f32, reduction 'mean' and 'none' ---
    B, C, epoch = 8, 16, 5
    inputs = jax.random.normal(k1, (B, C), dtype=jnp.float32)
    target = jax.random.randint(k2, (B,), 0, C, dtype=jnp.int32)

    loss_mean = jax.block_until_ready(cyclical_focal_loss(inputs, target, epoch))
    ref_mean = _reference_loss(inputs, target, epoch)
    assert jnp.allclose(loss_mean, ref_mean, rtol=1e-4, atol=1e-5), (loss_mean, ref_mean)

    loss_none = jax.block_until_ready(
        cyclical_focal_loss(inputs, target, epoch, reduction='none'))
    ref_none = _reference_loss(inputs, target, epoch, reduction='none')
    assert jnp.allclose(loss_none, ref_none, rtol=1e-4, atol=1e-5), (loss_none, ref_none)

    # --- case 2: multi-tile grid with a masked tail block (B not a multiple of TB),
    #             and the other branch of the eta schedule ---
    B2, C2, epoch2 = 20, 16, 150
    x2 = jax.random.normal(k3, (B2, C2), dtype=jnp.float32)
    t2 = jax.random.randint(k4, (B2,), 0, C2, dtype=jnp.int32)
    loss2 = jax.block_until_ready(cyclical_focal_loss(x2, t2, epoch2, block_batch=8))
    ref2 = _reference_loss(x2, t2, epoch2)
    assert jnp.allclose(loss2, ref2, rtol=1e-4, atol=1e-5), (loss2, ref2)

    # --- case 3: bf16 inputs stream natively; compute stays f32 in-kernel ---
    x_bf16 = inputs.astype(jnp.bfloat16)
    loss_bf = jax.block_until_ready(cyclical_focal_loss(x_bf16, target, epoch))
    ref_bf = _reference_loss(x_bf16.astype(jnp.float32), target, epoch)
    assert jnp.allclose(loss_bf, ref_bf, rtol=1e-4, atol=1e-4), (loss_bf, ref_bf)

    # --- case 4: mid-sized batch -> auto tile heuristic forces >= 2 tiles (v7x path)
    #             with a masked tail block ---
    B4, C4, epoch4 = 300, 32, 40
    x4 = jax.random.normal(k5, (B4, C4), dtype=jnp.float32)
    t4 = jax.random.randint(k6, (B4,), 0, C4, dtype=jnp.int32)
    loss4 = jax.block_until_ready(cyclical_focal_loss(x4, t4, epoch4))
    ref4 = _reference_loss(x4, t4, epoch4)
    assert jnp.allclose(loss4, ref4, rtol=1e-4, atol=1e-5), (loss4, ref4)

    # --- case 5: eps == 0 specialization (off-target branch fully dropped) ---
    loss5 = jax.block_until_ready(
        cyclical_focal_loss(inputs, target, epoch, eps=0.0, reduction='none'))
    ref5 = _reference_loss(inputs, target, epoch, eps=0.0, reduction='none')
    assert jnp.allclose(loss5, ref5, rtol=1e-4, atol=1e-5), (loss5, ref5)

    # --- case 6: non-trivial target-side gammas (w_t array path) ---
    loss6 = jax.block_until_ready(
        cyclical_focal_loss(inputs, target, epoch, gamma_pos=2, gamma_hc=1, eps=0.05))
    ref6 = _reference_loss(inputs, target, epoch, gamma_pos=2, gamma_hc=1, eps=0.05)
    assert jnp.allclose(loss6, ref6, rtol=1e-4, atol=1e-5), (loss6, ref6)

    print("KERNEL_OK")
</pallas_src>

<mosaic_0001>
module attributes {stable_mosaic.version = 11 : i64} {
  func.func @_cyclical_focal_kernel(%arg0: i32, %arg1: memref<8x16xf32, #tpu.memory_space<vmem>>, %arg2: memref<8x1xi32, #tpu.memory_space<vmem>>, %arg3: memref<1x1x8xf32, #tpu.memory_space<vmem>>) attributes {dimension_semantics = [#tpu.dimension_semantics<parallel>], iteration_bounds = array<i64: 1>, scalar_prefetch = 0 : i64, scratch_operands = 0 : i64, tpu.core_type = #tpu.core_type<tc>, window_params = [{transform_indices = @transform_0, window_bounds = array<i64: 8, 16>}, {transform_indices = @transform_1, window_bounds = array<i64: 8, 1>}, {transform_indices = @transform_2, window_bounds = array<i64: 1, 1, 8>}]} {
    %c0 = arith.constant 0 : index
    %c0_0 = arith.constant 0 : index
    %0 = vector.load %arg1[%c0, %c0_0] : memref<8x16xf32, #tpu.memory_space<vmem>>, vector<8x16xf32>
    %cst = arith.constant dense<0xFF800000> : vector<8xf32>
    %1 = vector.multi_reduction <maximumf>, %0, %cst [1] : vector<8x16xf32> to vector<8xf32>
    %2 = vector.shape_cast %1 : vector<8xf32> to vector<8x1xf32>
    %3 = vector.broadcast %2 : vector<8x1xf32> to vector<8x16xf32>
    %4 = arith.subf %0, %3 : vector<8x16xf32>
    %5 = math.exp %4 : vector<8x16xf32>
    %cst_1 = arith.constant dense<0.000000e+00> : vector<8xf32>
    %6 = vector.multi_reduction <add>, %5, %cst_1 [1] : vector<8x16xf32> to vector<8xf32>
    %7 = vector.shape_cast %6 : vector<8xf32> to vector<8x1xf32>
    %8 = math.log %7 : vector<8x1xf32>
    %cst_2 = arith.constant 1.000000e+00 : f32
    %9 = vector.broadcast %cst_2 : f32 to vector<8x1xf32>
    %10 = arith.divf %9, %7 : vector<8x1xf32>
    %11 = vector.broadcast %10 : vector<8x1xf32> to vector<8x16xf32>
    %12 = arith.mulf %5, %11 : vector<8x16xf32>
    %c0_3 = arith.constant 0 : index
    %c0_4 = arith.constant 0 : index
    %13 = vector.load %arg2[%c0_3, %c0_4] : memref<8x1xi32, #tpu.memory_space<vmem>>, vector<8x1xi32>
    %14 = tpu.iota {dimensions = array<i32: 1>} : vector<8x16xi32>
    %15 = vector.broadcast %13 : vector<8x1xi32> to vector<8x16xi32>
    %16 = arith.cmpi eq, %14, %15 : vector<8x16xi32>
    %17 = arith.mulf %12, %12 : vector<8x16xf32>
    %18 = arith.mulf %17, %17 : vector<8x16xf32>
    %cst_5 = arith.constant 0.0502512567 : f32
    %19 = vector.broadcast %cst_5 : f32 to vector<8x16xf32>
    %20 = arith.mulf %19, %18 : vector<8x16xf32>
    %cst_6 = arith.constant 0.949748754 : f32
    %21 = vector.broadcast %cst_6 : f32 to vector<8x16xf32>
    %22 = arith.addf %20, %21 : vector<8x16xf32>
    %cst_7 = arith.constant 6.250000e-03 : f32
    %23 = vector.broadcast %cst_7 : f32 to vector<8x16xf32>
    %24 = arith.mulf %23, %22 : vector<8x16xf32>
    %cst_8 = arith.constant 9.062500e-01 : f32
    %25 = vector.broadcast %cst_8 : f32 to vector<8x16xf32>
    %26 = arith.select %16, %25, %24 : vector<8x16xi1>, vector<8x16xf32>
    %27 = arith.mulf %26, %4 : vector<8x16xf32>
    %cst_9 = arith.constant dense<0.000000e+00> : vector<8xf32>
    %28 = vector.multi_reduction <add>, %27, %cst_9 [1] : vector<8x16xf32> to vector<8xf32>
    %29 = vector.shape_cast %28 : vector<8xf32> to vector<8x1xf32>
    %cst_10 = arith.constant dense<0.000000e+00> : vector<8xf32>
    %30 = vector.multi_reduction <add>, %26, %cst_10 [1] : vector<8x16xf32> to vector<8xf32>
    %31 = vector.shape_cast %30 : vector<8xf32> to vector<8x1xf32>
    %32 = arith.mulf %8, %31 : vector<8x1xf32>
    %33 = arith.subf %32, %29 : vector<8x1xf32>
    %34 = vector.shape_cast %33 : vector<8x1xf32> to vector<1x8xf32>
    %c8_i32 = arith.constant 8 : i32
    %35 = arith.muli %arg0, %c8_i32 : i32
    %36 = tpu.iota {dimensions = array<i32: 1>} : vector<1x8xi32>
    %37 = vector.broadcast %35 : i32 to vector<1x8xi32>
    %38 = arith.addi %37, %36 : vector<1x8xi32>
    %c8_i32_11 = arith.constant 8 : i32
    %39 = vector.broadcast %c8_i32_11 : i32 to vector<1x8xi32>
    %40 = arith.cmpi slt, %38, %39 : vector<1x8xi32>
    %cst_12 = arith.constant 0.000000e+00 : f32
    %41 = vector.broadcast %cst_12 : f32 to vector<1x8xf32>
    %42 = arith.select %40, %34, %41 : vector<1x8xi1>, vector<1x8xf32>
    %43 = vector.shape_cast %42 : vector<1x8xf32> to vector<1x1x8xf32>
    %c0_13 = arith.constant 0 : index
    %c0_14 = arith.constant 0 : index
    %c0_15 = arith.constant 0 : index
    %44 = vector.load %arg3[%c0_13, %c0_14, %c0_15] : memref<1x1x8xf32, #tpu.memory_space<vmem>>, vector<1x1x8xf32>
    tpu.vector_store %arg3[%c0_13, %c0_14, %c0_15], %43 {strides = array<i32>} : memref<1x1x8xf32, #tpu.memory_space<vmem>>, vector<1x1x8xf32>,
    return
  }
  func.func @transform_0(%arg0: i32) -> (i32, i32) {
    %c0_i32 = arith.constant 0 : i32
    %c0_i32_0 = arith.constant 0 : i32
    return %arg0, %c0_i32 : i32, i32
  }
  func.func @transform_1(%arg0: i32) -> (i32, i32) {
    %c0_i32 = arith.constant 0 : i32
    %c0_i32_0 = arith.constant 0 : i32
    return %arg0, %c0_i32 : i32, i32
  }
  func.func @transform_2(%arg0: i32) -> (i32, i32, i32) {
    %c0_i32 = arith.constant 0 : i32
    %c0_i32_0 = arith.constant 0 : i32
    %c0_i32_1 = arith.constant 0 : i32
    return %arg0, %c0_i32, %c0_i32_0 : i32, i32, i32
  }
}

</mosaic_0001>

<llo_original>
// kernel: tpu_custom_call.1
$region0: #{tpu_custom_call.1}
  #allocation0 [shape = 'u32[]', space=smem, size = 0x4, offset = 0x4, fixed_abs, tag = 'smem constant byte address 0x4 - core index']
  #allocation1 [shape = 'u32[144,128]{1,0:T(1,128)}', space=vmem, size = 0x12000, scoped, tag = 'internal scratch']
  %s0 = inlined_call_operand.vmem [shape: f32[8,16], index: 0, kind: input, shape index: {}]
  %s1 = inlined_call_operand.vmem [shape: s32[8,1], index: 1, kind: input, shape index: {}]
  %s2 = inlined_call_operand.hbm [shape: f32[1,1,8], index: 2, kind: output, shape index: {}]
  %s3 = sld [smem:[#allocation0]]
  $region18: #{tpu_custom_call.1} parent=0
    _
  %s5 = ssub.s32 1, %s3
  %s6 = scalar_select 0, %s5, %s3
  $region1: #{tpu_custom_call.1} parent=0
    #allocation2 [shape = 'u8[512]{0}', space=vmem, size = 0x400, scoped, tag = 'output window, operand 0, single buffered']
    #allocation3 [shape = 's32[1]{0}', space=sflag, size = 0x4, scoped, tag = 'scoped memory for tpu_custom_call.1']
    %7 = vsyncpa [#allocation3], 0
    // Predicated region
    $region2: #{tpu_custom_call.1} parent=1 // pred_check
      _
    $region3: #{tpu_custom_call.1} parent=1 // pred_check_branch
      %9 = sbr.rel (0) target = $region5
    $region4: #{tpu_custom_call.1} parent=1 // pred_region
      _
    $region5: #{tpu_custom_call.1} parent=1 // pred_fallthru
      _
    // Predicated region
    $region6: #{tpu_custom_call.1} parent=1 // pred_check
      _
    $region7: #{tpu_custom_call.1} parent=1 // pred_check_branch
      %11 = sbr.rel (0) target = $region9
    $region8: #{tpu_custom_call.1} parent=1 // pred_region
      _
    $region9: #{tpu_custom_call.1} parent=1 // pred_fallthru
      _
    %v12 = vld [vmem:[%s0] sm:$0xff]
    %vm13 = vcmask 130048
    %v14 = vsel %vm13, %v12, -inf
    %15 = vmax.xlane.f32.xlu0 %v14
    %v16 = vpop.xlane.xlu0 %15
    %v17 = vsub.f32 %v12, %v16
    %v18 = vmul.f32 %v17, 1.442695
    %v19 = vpow.pop %v18
    %v20 = vsel %vm13, %v19, 0.0
    %21 = vadd.xlane.f32.xlu0 %v20
    %v22 = vpop.xlane.xlu0 %21
    %v23 = vlog2.pop %v22
    %v24 = vmul.f32 %v23, 0.6931472
    %v25 = vrcp.pop %v22
    %v26 = vmul.f32 1.0, %v25
    %v27 = vmul.f32 %v19, %v26
    %v28 = vld [vmem:[%s1] sm:$0xff]
    %v29 = vlaneseq
    %v30 = vand.u32 %v29, 127
    %31 = vset.pattern.permute.xlu0 0
    %32 = vperm.xlu0 %31, %v28
    %v33 = vpop.permute.xlu0 %32
    %vm34 = vcmp.eq.s32.totalorder %v30, %v33
    %v35 = vmul.f32 %v27, %v27
    %v36 = vmul.f32 %v35, %v35
    %v37 = vmul.f32 %v36, 0.050251257
    %v38 = vadd.f32 %v37, 0.94974875
    %v39 = vmul.f32 %v38, 0.00625
    %v40 = vsel %vm34, 0.90625, %v39
    %v41 = vmul.f32 %v40, %v17
    %v42 = vsel %vm13, %v41, 0.0
    %43 = vadd.xlane.f32.xlu0 %v42
    %v44 = vpop.xlane.xlu0 %43
    %v45 = vsel %vm13, %v40, 0.0
    %46 = vadd.xlane.f32.xlu0 %v45
    %v47 = vpop.xlane.xlu0 %46
    %v48 = vmul.f32 %v24, %v47
    %v49 = vsub.f32 %v48, %v44
    %s50 = smul.u32 0, 8
    %v51 = vstv %s50
    %v52 = vadd.s32 %v51, %v30
    %vm53 = vcmp.lt.s32.totalorder %v52, 8
    %v55 = vlaneseq
    %v56 = vshrl.u32 %v55, 7
    %v57 = vsub.s32 %v30, %v56
    %v58 = vrot.slane %v49, %v57
    %v60 = vsel %vm53, %v58, 0.0
    %vm61 = vcmask 57344
    %62 = vst.msk [vmem:[#allocation2] sm:$0x1] %vm61, %v60
    // Predicated region
    $region10: #{tpu_custom_call.1} parent=1 // pred_check
      _
    $region11: #{tpu_custom_call.1} parent=1 // pred_check_branch
      %64 = sbr.rel (0) target = $region13
    $region12: #{tpu_custom_call.1} parent=1 // pred_region
      %s66 = ssub.s32 16, 16
      %67 = vsyncadd [#allocation3], %s66
      %s69 = sshll.u32 [#allocation2], 4
      %s70 = int_to_ptr.vmem [resolvable:$true] %s69
      %72 = dma.vmem_to_hbm [thread:$0]  %s70, 16, %s2, [#allocation3]
    $region13: #{tpu_custom_call.1} parent=1 // pred_fallthru
      _
    // Predicated region
    $region14: #{tpu_custom_call.1} parent=1 // pred_check
      _
    $region15: #{tpu_custom_call.1} parent=1 // pred_check_branch
      %74 = sbr.rel (0) target = $region17
    $region16: #{tpu_custom_call.1} parent=1 // pred_region
      %75 = dma.done [#allocation3], 16
    $region17: #{tpu_custom_call.1} parent=1 // pred_fallthru
      _
    %76 = vsyncpa [#allocation3], 1

</llo_original>
